<compile_context>
chip_gen: v6e
topology: v6e:2x2x1
jax: 0.10.0
libtpu: 0.0.40
codegen_flags: <defaults>
</compile_context>

<pallas_src>
import math

import jax
import jax.numpy as jnp
from jax.experimental import pallas as pl
from jax.experimental.pallas import tpu as pltpu


def _round_up(x, m):
    return ((x + m - 1) // m) * m


# ---------------------------------------------------------------------------
# Kernel
# ---------------------------------------------------------------------------
def _fuse_kernel(orig_ref, x1_ref, x2_ref,
                 w1_ref, b1_ref, w2_ref, b2_ref, w3_ref, b3_ref,
                 out_ref):
    # Elementwise work in f32 (v5e has no bf16 VPU/EUP).
    o = orig_ref[...].astype(jnp.float32)
    x1 = x1_ref[...].astype(jnp.float32)
    x2 = x2_ref[...].astype(jnp.float32)
    H = o.shape[-1]

    mxu = w1_ref.dtype  # bf16 MXU operands, f32 accumulation

    def branch(x, w_ref, b_ref):
        # Folded weight layout: rows [0:H] -> o, [H:2H] -> x, [2H:3H] -> o*x.
        # Static ref slices feed the MXU directly (no whole-weight materialization).
        acc = jnp.dot(o.astype(mxu), w_ref[0:H, :],
                      preferred_element_type=jnp.float32)
        acc += jnp.dot(x.astype(mxu), w_ref[H:2 * H, :],
                       preferred_element_type=jnp.float32)
        acc += jnp.dot((o * x).astype(mxu), w_ref[2 * H:3 * H, :],
                       preferred_element_type=jnp.float32)
        return jnp.maximum(acc + b_ref[...], 0.0)  # bias + ReLU in f32

    out1 = branch(x1, w1_ref, b1_ref)
    out2 = branch(x2, w2_ref, b2_ref)

    logits = jnp.dot(out1.astype(mxu), w3_ref[0:H, :],
                     preferred_element_type=jnp.float32)
    logits += jnp.dot(out2.astype(mxu), w3_ref[H:2 * H, :],
                      preferred_element_type=jnp.float32)
    fuse_prob = jax.nn.sigmoid(logits + b3_ref[...])  # EUP, f32

    out_ref[...] = (fuse_prob * x1 + (1.0 - fuse_prob) * x2).astype(out_ref.dtype)


# ---------------------------------------------------------------------------
# Wrapper-side helpers
# ---------------------------------------------------------------------------
def _fold_branch_weight(w, mxu_dtype):
    """cat([o,x,o-x,o*x]) @ [Wa;Wb;Wc;Wd] == o@(Wa+Wc) + x@(Wb-Wc) + (o*x)@Wd.

    Fold is done in f32, then cast to the MXU dtype (bf16)."""
    H = w.shape[-1]
    w = w.astype(jnp.float32)
    wa, wb, wc, wd = w[0:H], w[H:2 * H], w[2 * H:3 * H], w[3 * H:4 * H]
    return jnp.concatenate([wa + wc, wb - wc, wd], axis=0).astype(mxu_dtype)


def _fold_params(params, mxu_dtype=jnp.bfloat16):
    return {
        "w1": _fold_branch_weight(params["w1"], mxu_dtype),
        "w2": _fold_branch_weight(params["w2"], mxu_dtype),
        "w3": params["w3"].astype(jnp.float32).astype(mxu_dtype),
        "b1": params["b1"].astype(jnp.float32),
        "b2": params["b2"].astype(jnp.float32),
        "b3": params["b3"].astype(jnp.float32),
    }


def _vmem_budget_bytes():
    """Generation-aware VMEM limit: ~75% of physical, capped at 96 MiB.

    v5e/v6e (128 MiB physical) -> 96 MiB; v7x (64 MiB) -> 48 MiB; if the hardware
    query is unavailable, fall back to 48 MiB (safe on every generation and still
    well above the 16/32 MiB default scoped limit)."""
    try:
        cap = int(pltpu.get_tpu_info().vmem_capacity_bytes)
    except Exception:  # hardware query unavailable (e.g. interpret mode)
        return 48 * 1024 * 1024
    return min(cap * 3 // 4, 96 * 1024 * 1024)


def _pick_tile_m(M, H, requested, budget_bytes, act_bytes):
    """Row-tile size: as large as the VMEM budget allows, <= requested, >= 8."""
    # Single-buffered folded bf16 weights (3H+3H+2H rows) + f32 biases, VMEM-resident.
    weight_bytes = 8 * H * H * 2 + 3 * H * 4
    # Per-row VMEM: pipelined I/O (3 inputs + 1 output, double-buffered) plus a rough
    # allowance for in-kernel f32/bf16 temporaries (o, x1, x2, o*x, out1, out2, acc, p).
    per_row = 4 * H * act_bytes * 2 + 12 * H * 4
    headroom = 8 * 1024 * 1024  # Mosaic internal scratch / staging
    cap = (budget_bytes - weight_bytes - headroom) // max(per_row, 1)
    cap = max(8, (cap // 8) * 8)
    tm = max(8, min(requested, cap, _round_up(M, 8)))
    # Keep >= 2 row-grid steps when M is large enough that splitting cannot hurt,
    # so both v7x TensorCores get work under dimension_semantics=("parallel",).
    if tm >= M and M >= 512:
        tm = _round_up((M + 1) // 2, 8)
    return tm


# ---------------------------------------------------------------------------
# Public entry point
# ---------------------------------------------------------------------------
def fuse_layer(orig, input1, input2, params, *, tile_m=512,
               mxu_dtype=jnp.bfloat16, activation_dtype=None):
    """orig/input1/input2: (..., H).  params: dict with w1/w2 (4H,H), w3 (2H,H)
    stored pre-transposed as (in, out), biases (1,H).

    tile_m: requested row-tile size (multiple of 8); it is capped by a VMEM-derived
    bound and clamped for tiny inputs.  activation_dtype=jnp.bfloat16 optionally
    halves the HBM activation stream for bandwidth-bound small-H shapes."""
    H = orig.shape[-1]
    lead = orig.shape[:-1]
    M = math.prod(lead) if lead else 1

    fp = _fold_params(params, mxu_dtype)

    act_dtype = activation_dtype if activation_dtype is not None else orig.dtype
    o_rows = orig.reshape(M, H).astype(act_dtype)
    x1_rows = input1.reshape(M, H).astype(act_dtype)
    x2_rows = input2.reshape(M, H).astype(act_dtype)

    budget = _vmem_budget_bytes()
    tm = _pick_tile_m(M, H, tile_m, budget, jnp.dtype(act_dtype).itemsize)
    grid = pl.cdiv(M, tm)  # ragged M -> masked boundary block, no wrapper jnp.pad

    row_spec = pl.BlockSpec((tm, H), lambda i: (i, 0))
    # VMEM-resident weights/biases: constant index_map (DMA'd once, reused across the
    # row grid) and Buffered(1) so the dead second pipeline buffer is never allocated.
    resident = lambda shape: pl.BlockSpec(shape, lambda i: (0, 0),
                                          pipeline_mode=pl.Buffered(1))

    out = pl.pallas_call(
        _fuse_kernel,
        out_shape=jax.ShapeDtypeStruct((M, H), act_dtype),
        grid_spec=pltpu.PrefetchScalarGridSpec(
            num_scalar_prefetch=0,
            grid=(grid,),
            in_specs=[
                row_spec, row_spec, row_spec,
                resident((3 * H, H)), resident((1, H)),
                resident((3 * H, H)), resident((1, H)),
                resident((2 * H, H)), resident((1, H)),
            ],
            out_specs=row_spec,
        ),
        compiler_params=pltpu.CompilerParams(
            dimension_semantics=("parallel",),   # shard row tiles across TCs
            vmem_limit_bytes=budget,
        ),
    )(o_rows, x1_rows, x2_rows,
      fp["w1"], fp["b1"], fp["w2"], fp["b2"], fp["w3"], fp["b3"])

    return out.reshape(*lead, H)


# ---------------------------------------------------------------------------
# Parameter init + references
# ---------------------------------------------------------------------------
def init_params(key, hidden, *, dtype=jnp.float32):
    """nn.Linear-shaped params; weights stored pre-transposed as (in, out) == W^T."""
    ks = jax.random.split(key, 6)

    def xavier(k, fan_in, fan_out):
        limit = (6.0 / (fan_in + fan_out)) ** 0.5
        return jax.random.uniform(k, (fan_in, fan_out), dtype, -limit, limit)

    def bias(k, fan_in, fan_out):
        limit = 1.0 / (fan_in ** 0.5)
        return jax.random.uniform(k, (1, fan_out), jnp.float32, -limit, limit)

    H = hidden
    return {
        "w1": xavier(ks[0], 4 * H, H), "b1": bias(ks[1], 4 * H, H),
        "w2": xavier(ks[2], 4 * H, H), "b2": bias(ks[3], 4 * H, H),
        "w3": xavier(ks[4], 2 * H, H), "b3": bias(ks[5], 2 * H, H),
    }


def fuse_layer_ref(orig, x1, x2, p):
    """Exact f32 math of the original PyTorch forward (unfolded weights)."""
    def lin(c, w, b):
        return jnp.dot(c, w.astype(jnp.float32)) + b.astype(jnp.float32)[0]

    c1 = jnp.concatenate([orig, x1, orig - x1, orig * x1], axis=-1)
    out1 = jax.nn.relu(lin(c1, p["w1"], p["b1"]))
    c2 = jnp.concatenate([orig, x2, orig - x2, orig * x2], axis=-1)
    out2 = jax.nn.relu(lin(c2, p["w2"], p["b2"]))
    prob = jax.nn.sigmoid(lin(jnp.concatenate([out1, out2], axis=-1), p["w3"], p["b3"]))
    return prob * x1 + (1.0 - prob) * x2


def fuse_layer_ref_matched(orig, x1, x2, fp):
    """Matched-precision reference: same folded bf16 weights, same 3-dot
    decomposition, f32 accumulation — mirrors the kernel math in plain jnp."""
    H = orig.shape[-1]
    mxu = fp["w1"].dtype

    def branch(x, w, b):
        acc = jnp.dot(orig.astype(mxu), w[0:H], preferred_element_type=jnp.float32)
        acc += jnp.dot(x.astype(mxu), w[H:2 * H], preferred_element_type=jnp.float32)
        acc += jnp.dot((orig * x).astype(mxu), w[2 * H:3 * H],
                       preferred_element_type=jnp.float32)
        return jnp.maximum(acc + b, 0.0)

    out1 = branch(x1, fp["w1"], fp["b1"])
    out2 = branch(x2, fp["w2"], fp["b2"])
    logits = jnp.dot(out1.astype(mxu), fp["w3"][0:H], preferred_element_type=jnp.float32)
    logits += jnp.dot(out2.astype(mxu), fp["w3"][H:2 * H],
                      preferred_element_type=jnp.float32)
    prob = jax.nn.sigmoid(logits + fp["b3"])
    return prob * x1 + (1.0 - prob) * x2


# ---------------------------------------------------------------------------
# Demo / self-check
# ---------------------------------------------------------------------------
if __name__ == "__main__":
    key = jax.random.PRNGKey(0)
    k_o, k_1, k_2, k_p = jax.random.split(key, 4)

    batch, seq, hidden = 2, 8, 32            # small synthetic bert_hidden_size
    orig = jax.random.normal(k_o, (batch, seq, hidden), jnp.float32)
    input1 = jax.random.normal(k_1, (batch, seq, hidden), jnp.float32)
    input2 = jax.random.normal(k_2, (batch, seq, hidden), jnp.float32)
    params = init_params(k_p, hidden)

    out = jax.block_until_ready(fuse_layer(orig, input1, input2, params))
    assert out.shape == (batch, seq, hidden)

    # Matched-precision check (same folded bf16 weights, f32 accumulation).
    folded = _fold_params(params, jnp.bfloat16)
    ref_matched = fuse_layer_ref_matched(orig, input1, input2, folded)
    assert jnp.allclose(out, ref_matched, atol=5e-3, rtol=5e-3), "mismatch vs matched ref"

    # Fidelity vs the exact f32 math of the original module (loose tol: bf16 MXU casts).
    ref_f32 = fuse_layer_ref(orig, input1, input2, params)
    assert jnp.allclose(out, ref_f32, atol=5e-2, rtol=5e-2), "mismatch vs f32 reference"

    # Ragged row count (M = 15): cdiv grid + masked boundary block, no wrapper jnp.pad.
    orig_r = orig.reshape(-1, hidden)[:15].reshape(3, 5, hidden)
    in1_r = input1.reshape(-1, hidden)[:15].reshape(3, 5, hidden)
    in2_r = input2.reshape(-1, hidden)[:15].reshape(3, 5, hidden)
    out_r = jax.block_until_ready(fuse_layer(orig_r, in1_r, in2_r, params))
    ref_r = fuse_layer_ref_matched(orig_r, in1_r, in2_r, folded)
    assert out_r.shape == (3, 5, hidden)
    assert jnp.allclose(out_r, ref_r, atol=5e-3, rtol=5e-3), "ragged-M mismatch"

    print("KERNEL_OK")
</pallas_src>

<mosaic_0001>
module attributes {stable_mosaic.version = 11 : i64} {
  func.func @_fuse_kernel(%arg0: i32, %arg1: memref<16x32xf32, #tpu.memory_space<vmem>>, %arg2: memref<16x32xf32, #tpu.memory_space<vmem>>, %arg3: memref<16x32xf32, #tpu.memory_space<vmem>>, %arg4: memref<96x32xbf16, #tpu.memory_space<vmem>>, %arg5: memref<1x32xf32, #tpu.memory_space<vmem>>, %arg6: memref<96x32xbf16, #tpu.memory_space<vmem>>, %arg7: memref<1x32xf32, #tpu.memory_space<vmem>>, %arg8: memref<64x32xbf16, #tpu.memory_space<vmem>>, %arg9: memref<1x32xf32, #tpu.memory_space<vmem>>, %arg10: memref<16x32xf32, #tpu.memory_space<vmem>>) attributes {dimension_semantics = [#tpu.dimension_semantics<parallel>], iteration_bounds = array<i64: 1>, scalar_prefetch = 0 : i64, scratch_operands = 0 : i64, tpu.core_type = #tpu.core_type<tc>, window_params = [{transform_indices = @transform_0, window_bounds = array<i64: 16, 32>}, {transform_indices = @transform_1, window_bounds = array<i64: 16, 32>}, {transform_indices = @transform_2, window_bounds = array<i64: 16, 32>}, {pipeline_mode = #tpu.pipeline_mode<synchronous>, transform_indices = @transform_3, window_bounds = array<i64: 96, 32>}, {pipeline_mode = #tpu.pipeline_mode<synchronous>, transform_indices = @transform_4, window_bounds = array<i64: 1, 32>}, {pipeline_mode = #tpu.pipeline_mode<synchronous>, transform_indices = @transform_5, window_bounds = array<i64: 96, 32>}, {pipeline_mode = #tpu.pipeline_mode<synchronous>, transform_indices = @transform_6, window_bounds = array<i64: 1, 32>}, {pipeline_mode = #tpu.pipeline_mode<synchronous>, transform_indices = @transform_7, window_bounds = array<i64: 64, 32>}, {pipeline_mode = #tpu.pipeline_mode<synchronous>, transform_indices = @transform_8, window_bounds = array<i64: 1, 32>}, {transform_indices = @transform_9, window_bounds = array<i64: 16, 32>}]} {
    %c0 = arith.constant 0 : index
    %c0_0 = arith.constant 0 : index
    %0 = vector.load %arg1[%c0, %c0_0] : memref<16x32xf32, #tpu.memory_space<vmem>>, vector<16x32xf32>
    %c0_1 = arith.constant 0 : index
    %c0_2 = arith.constant 0 : index
    %1 = vector.load %arg2[%c0_1, %c0_2] : memref<16x32xf32, #tpu.memory_space<vmem>>, vector<16x32xf32>
    %c0_3 = arith.constant 0 : index
    %c0_4 = arith.constant 0 : index
    %2 = vector.load %arg3[%c0_3, %c0_4] : memref<16x32xf32, #tpu.memory_space<vmem>>, vector<16x32xf32>
    %3 = arith.truncf %0 : vector<16x32xf32> to vector<16x32xbf16>
    %c0_5 = arith.constant 0 : index
    %c0_6 = arith.constant 0 : index
    %4 = vector.load %arg4[%c0_5, %c0_6] : memref<96x32xbf16, #tpu.memory_space<vmem>>, vector<32x32xbf16>
    %cst = arith.constant dense<0.000000e+00> : vector<16x32xf32>
    %5 = tpu.matmul %3, %4, %cst {dimension_numbers = #tpu.dot_dimension_numbers<[1], [0], [0], [1], [0, 0, 1, 1], [], []>} : vector<16x32xbf16>, vector<32x32xbf16>, vector<16x32xf32> -> vector<16x32xf32>
    %6 = arith.truncf %1 : vector<16x32xf32> to vector<16x32xbf16>
    %c32 = arith.constant 32 : index
    %c0_7 = arith.constant 0 : index
    %7 = vector.load %arg4[%c32, %c0_7] : memref<96x32xbf16, #tpu.memory_space<vmem>>, vector<32x32xbf16>
    %cst_8 = arith.constant dense<0.000000e+00> : vector<16x32xf32>
    %8 = tpu.matmul %6, %7, %cst_8 {dimension_numbers = #tpu.dot_dimension_numbers<[1], [0], [0], [1], [0, 0, 1, 1], [], []>} : vector<16x32xbf16>, vector<32x32xbf16>, vector<16x32xf32> -> vector<16x32xf32>
    %9 = arith.addf %5, %8 : vector<16x32xf32>
    %10 = arith.mulf %0, %1 : vector<16x32xf32>
    %11 = arith.truncf %10 : vector<16x32xf32> to vector<16x32xbf16>
    %c64 = arith.constant 64 : index
    %c0_9 = arith.constant 0 : index
    %12 = vector.load %arg4[%c64, %c0_9] : memref<96x32xbf16, #tpu.memory_space<vmem>>, vector<32x32xbf16>
    %cst_10 = arith.constant dense<0.000000e+00> : vector<16x32xf32>
    %13 = tpu.matmul %11, %12, %cst_10 {dimension_numbers = #tpu.dot_dimension_numbers<[1], [0], [0], [1], [0, 0, 1, 1], [], []>} : vector<16x32xbf16>, vector<32x32xbf16>, vector<16x32xf32> -> vector<16x32xf32>
    %14 = arith.addf %9, %13 : vector<16x32xf32>
    %c0_11 = arith.constant 0 : index
    %c0_12 = arith.constant 0 : index
    %15 = vector.load %arg5[%c0_11, %c0_12] : memref<1x32xf32, #tpu.memory_space<vmem>>, vector<1x32xf32>
    %16 = vector.broadcast %15 : vector<1x32xf32> to vector<16x32xf32>
    %17 = arith.addf %14, %16 : vector<16x32xf32>
    %cst_13 = arith.constant 0.000000e+00 : f32
    %18 = vector.broadcast %cst_13 : f32 to vector<16x32xf32>
    %19 = arith.maximumf %17, %18 : vector<16x32xf32>
    %20 = arith.truncf %0 : vector<16x32xf32> to vector<16x32xbf16>
    %c0_14 = arith.constant 0 : index
    %c0_15 = arith.constant 0 : index
    %21 = vector.load %arg6[%c0_14, %c0_15] : memref<96x32xbf16, #tpu.memory_space<vmem>>, vector<32x32xbf16>
    %cst_16 = arith.constant dense<0.000000e+00> : vector<16x32xf32>
    %22 = tpu.matmul %20, %21, %cst_16 {dimension_numbers = #tpu.dot_dimension_numbers<[1], [0], [0], [1], [0, 0, 1, 1], [], []>} : vector<16x32xbf16>, vector<32x32xbf16>, vector<16x32xf32> -> vector<16x32xf32>
    %23 = arith.truncf %2 : vector<16x32xf32> to vector<16x32xbf16>
    %c32_17 = arith.constant 32 : index
    %c0_18 = arith.constant 0 : index
    %24 = vector.load %arg6[%c32_17, %c0_18] : memref<96x32xbf16, #tpu.memory_space<vmem>>, vector<32x32xbf16>
    %cst_19 = arith.constant dense<0.000000e+00> : vector<16x32xf32>
    %25 = tpu.matmul %23, %24, %cst_19 {dimension_numbers = #tpu.dot_dimension_numbers<[1], [0], [0], [1], [0, 0, 1, 1], [], []>} : vector<16x32xbf16>, vector<32x32xbf16>, vector<16x32xf32> -> vector<16x32xf32>
    %26 = arith.addf %22, %25 : vector<16x32xf32>
    %27 = arith.mulf %0, %2 : vector<16x32xf32>
    %28 = arith.truncf %27 : vector<16x32xf32> to vector<16x32xbf16>
    %c64_20 = arith.constant 64 : index
    %c0_21 = arith.constant 0 : index
    %29 = vector.load %arg6[%c64_20, %c0_21] : memref<96x32xbf16, #tpu.memory_space<vmem>>, vector<32x32xbf16>
    %cst_22 = arith.constant dense<0.000000e+00> : vector<16x32xf32>
    %30 = tpu.matmul %28, %29, %cst_22 {dimension_numbers = #tpu.dot_dimension_numbers<[1], [0], [0], [1], [0, 0, 1, 1], [], []>} : vector<16x32xbf16>, vector<32x32xbf16>, vector<16x32xf32> -> vector<16x32xf32>
    %31 = arith.addf %26, %30 : vector<16x32xf32>
    %c0_23 = arith.constant 0 : index
    %c0_24 = arith.constant 0 : index
    %32 = vector.load %arg7[%c0_23, %c0_24] : memref<1x32xf32, #tpu.memory_space<vmem>>, vector<1x32xf32>
    %33 = vector.broadcast %32 : vector<1x32xf32> to vector<16x32xf32>
    %34 = arith.addf %31, %33 : vector<16x32xf32>
    %cst_25 = arith.constant 0.000000e+00 : f32
    %35 = vector.broadcast %cst_25 : f32 to vector<16x32xf32>
    %36 = arith.maximumf %34, %35 : vector<16x32xf32>
    %37 = arith.truncf %19 : vector<16x32xf32> to vector<16x32xbf16>
    %c0_26 = arith.constant 0 : index
    %c0_27 = arith.constant 0 : index
    %38 = vector.load %arg8[%c0_26, %c0_27] : memref<64x32xbf16, #tpu.memory_space<vmem>>, vector<32x32xbf16>
    %cst_28 = arith.constant dense<0.000000e+00> : vector<16x32xf32>
    %39 = tpu.matmul %37, %38, %cst_28 {dimension_numbers = #tpu.dot_dimension_numbers<[1], [0], [0], [1], [0, 0, 1, 1], [], []>} : vector<16x32xbf16>, vector<32x32xbf16>, vector<16x32xf32> -> vector<16x32xf32>
    %40 = arith.truncf %36 : vector<16x32xf32> to vector<16x32xbf16>
    %c32_29 = arith.constant 32 : index
    %c0_30 = arith.constant 0 : index
    %41 = vector.load %arg8[%c32_29, %c0_30] : memref<64x32xbf16, #tpu.memory_space<vmem>>, vector<32x32xbf16>
    %cst_31 = arith.constant dense<0.000000e+00> : vector<16x32xf32>
    %42 = tpu.matmul %40, %41, %cst_31 {dimension_numbers = #tpu.dot_dimension_numbers<[1], [0], [0], [1], [0, 0, 1, 1], [], []>} : vector<16x32xbf16>, vector<32x32xbf16>, vector<16x32xf32> -> vector<16x32xf32>
    %43 = arith.addf %39, %42 : vector<16x32xf32>
    %c0_32 = arith.constant 0 : index
    %c0_33 = arith.constant 0 : index
    %44 = vector.load %arg9[%c0_32, %c0_33] : memref<1x32xf32, #tpu.memory_space<vmem>>, vector<1x32xf32>
    %45 = vector.broadcast %44 : vector<1x32xf32> to vector<16x32xf32>
    %46 = arith.addf %43, %45 : vector<16x32xf32>
    %47 = arith.negf %46 : vector<16x32xf32>
    %48 = math.exp %47 : vector<16x32xf32>
    %cst_34 = arith.constant 1.000000e+00 : f32
    %49 = vector.broadcast %cst_34 : f32 to vector<16x32xf32>
    %50 = arith.addf %49, %48 : vector<16x32xf32>
    %51 = arith.divf %49, %50 : vector<16x32xf32>
    %52 = arith.mulf %51, %1 : vector<16x32xf32>
    %cst_35 = arith.constant 1.000000e+00 : f32
    %53 = vector.broadcast %cst_35 : f32 to vector<16x32xf32>
    %54 = arith.subf %53, %51 : vector<16x32xf32>
    %55 = arith.mulf %54, %2 : vector<16x32xf32>
    %56 = arith.addf %52, %55 : vector<16x32xf32>
    %c0_36 = arith.constant 0 : index
    %c0_37 = arith.constant 0 : index
    %57 = vector.load %arg10[%c0_36, %c0_37] : memref<16x32xf32, #tpu.memory_space<vmem>>, vector<16x32xf32>
    tpu.vector_store %arg10[%c0_36, %c0_37], %56 {strides = array<i32>} : memref<16x32xf32, #tpu.memory_space<vmem>>, vector<16x32xf32>,
    return
  }
  func.func @transform_0(%arg0: i32) -> (i32, i32) {
    %c0_i32 = arith.constant 0 : i32
    %c0_i32_0 = arith.constant 0 : i32
    return %arg0, %c0_i32 : i32, i32
  }
  func.func @transform_1(%arg0: i32) -> (i32, i32) {
    %c0_i32 = arith.constant 0 : i32
    %c0_i32_0 = arith.constant 0 : i32
    return %arg0, %c0_i32 : i32, i32
  }
  func.func @transform_2(%arg0: i32) -> (i32, i32) {
    %c0_i32 = arith.constant 0 : i32
    %c0_i32_0 = arith.constant 0 : i32
    return %arg0, %c0_i32 : i32, i32
  }
  func.func @transform_3(%arg0: i32) -> (i32, i32) {
    %c0_i32 = arith.constant 0 : i32
    %c0_i32_0 = arith.constant 0 : i32
    %c0_i32_1 = arith.constant 0 : i32
    return %c0_i32, %c0_i32_0 : i32, i32
  }
  func.func @transform_4(%arg0: i32) -> (i32, i32) {
    %c0_i32 = arith.constant 0 : i32
    %c0_i32_0 = arith.constant 0 : i32
    %c0_i32_1 = arith.constant 0 : i32
    return %c0_i32, %c0_i32_0 : i32, i32
  }
  func.func @transform_5(%arg0: i32) -> (i32, i32) {
    %c0_i32 = arith.constant 0 : i32
    %c0_i32_0 = arith.constant 0 : i32
    %c0_i32_1 = arith.constant 0 : i32
    return %c0_i32, %c0_i32_0 : i32, i32
  }
  func.func @transform_6(%arg0: i32) -> (i32, i32) {
    %c0_i32 = arith.constant 0 : i32
    %c0_i32_0 = arith.constant 0 : i32
    %c0_i32_1 = arith.constant 0 : i32
    return %c0_i32, %c0_i32_0 : i32, i32
  }
  func.func @transform_7(%arg0: i32) -> (i32, i32) {
    %c0_i32 = arith.constant 0 : i32
    %c0_i32_0 = arith.constant 0 : i32
    %c0_i32_1 = arith.constant 0 : i32
    return %c0_i32, %c0_i32_0 : i32, i32
  }
  func.func @transform_8(%arg0: i32) -> (i32, i32) {
    %c0_i32 = arith.constant 0 : i32
    %c0_i32_0 = arith.constant 0 : i32
    %c0_i32_1 = arith.constant 0 : i32
    return %c0_i32, %c0_i32_0 : i32, i32
  }
  func.func @transform_9(%arg0: i32) -> (i32, i32) {
    %c0_i32 = arith.constant 0 : i32
    %c0_i32_0 = arith.constant 0 : i32
    return %arg0, %c0_i32 : i32, i32
  }
}

</mosaic_0001>

<llo_original>
// kernel: tpu_custom_call.1
$region0: #{tpu_custom_call.1}
  #allocation0 [shape = 'u32[]', space=smem, size = 0x4, offset = 0x4, fixed_abs, tag = 'smem constant byte address 0x4 - core index']
  #allocation1 [shape = 'u32[144,128]{1,0:T(1,128)}', space=vmem, size = 0x12000, scoped, tag = 'internal scratch']
  %s0 = inlined_call_operand.vmem [shape: f32[16,32], index: 0, kind: input, shape index: {}]
  %s1 = inlined_call_operand.vmem [shape: f32[16,32], index: 1, kind: input, shape index: {}]
  %s2 = inlined_call_operand.vmem [shape: f32[16,32], index: 2, kind: input, shape index: {}]
  %s3 = inlined_call_operand.vmem [shape: bf16[96,32], index: 3, kind: input, shape index: {}]
  %s4 = inlined_call_operand.vmem [shape: f32[1,32], index: 4, kind: input, shape index: {}]
  %s5 = inlined_call_operand.vmem [shape: bf16[96,32], index: 5, kind: input, shape index: {}]
  %s6 = inlined_call_operand.vmem [shape: f32[1,32], index: 6, kind: input, shape index: {}]
  %s7 = inlined_call_operand.vmem [shape: bf16[64,32], index: 7, kind: input, shape index: {}]
  %s8 = inlined_call_operand.vmem [shape: f32[1,32], index: 8, kind: input, shape index: {}]
  %s9 = inlined_call_operand.hbm [shape: f32[16,32], index: 9, kind: output, shape index: {}]
  %s10 = sld [smem:[#allocation0]]
  $region46: #{tpu_custom_call.1} parent=0
    _
  %s12 = ssub.s32 1, %s10
  %s13 = scalar_select 0, %s12, %s10
  $region1: #{tpu_custom_call.1} parent=0
    #allocation2 [shape = 'u8[8192]{0}', space=vmem, size = 0x2000, scoped, tag = 'output window, operand 0, single buffered']
    #allocation3 [shape = 's32[1]{0}', space=sflag, size = 0x4, scoped, tag = 'scoped memory for tpu_custom_call.1']
    %14 = vsyncpa [#allocation3], 0
    // Predicated region
    $region2: #{tpu_custom_call.1} parent=1 // pred_check
      _
    $region3: #{tpu_custom_call.1} parent=1 // pred_check_branch
      %16 = sbr.rel (0) target = $region5
    $region4: #{tpu_custom_call.1} parent=1 // pred_region
      _
    $region5: #{tpu_custom_call.1} parent=1 // pred_fallthru
      _
    // Predicated region
    $region6: #{tpu_custom_call.1} parent=1 // pred_check
      _
    $region7: #{tpu_custom_call.1} parent=1 // pred_check_branch
      %18 = sbr.rel (0) target = $region9
    $region8: #{tpu_custom_call.1} parent=1 // pred_region
      _
    $region9: #{tpu_custom_call.1} parent=1 // pred_fallthru
      _
    // Predicated region
    $region10: #{tpu_custom_call.1} parent=1 // pred_check
      _
    $region11: #{tpu_custom_call.1} parent=1 // pred_check_branch
      %20 = sbr.rel (0) target = $region13
    $region12: #{tpu_custom_call.1} parent=1 // pred_region
      _
    $region13: #{tpu_custom_call.1} parent=1 // pred_fallthru
      _
    // Predicated region
    $region14: #{tpu_custom_call.1} parent=1 // pred_check
      _
    $region15: #{tpu_custom_call.1} parent=1 // pred_check_branch
      %22 = sbr.rel (0) target = $region17
    $region16: #{tpu_custom_call.1} parent=1 // pred_region
      _
    $region17: #{tpu_custom_call.1} parent=1 // pred_fallthru
      _
    // Predicated region
    $region18: #{tpu_custom_call.1} parent=1 // pred_check
      _
    $region19: #{tpu_custom_call.1} parent=1 // pred_check_branch
      %24 = sbr.rel (0) target = $region21
    $region20: #{tpu_custom_call.1} parent=1 // pred_region
      _
    $region21: #{tpu_custom_call.1} parent=1 // pred_fallthru
      _
    // Predicated region
    $region22: #{tpu_custom_call.1} parent=1 // pred_check
      _
    $region23: #{tpu_custom_call.1} parent=1 // pred_check_branch
      %26 = sbr.rel (0) target = $region25
    $region24: #{tpu_custom_call.1} parent=1 // pred_region
      _
    $region25: #{tpu_custom_call.1} parent=1 // pred_fallthru
      _
    // Predicated region
    $region26: #{tpu_custom_call.1} parent=1 // pred_check
      _
    $region27: #{tpu_custom_call.1} parent=1 // pred_check_branch
      %28 = sbr.rel (0) target = $region29
    $region28: #{tpu_custom_call.1} parent=1 // pred_region
      _
    $region29: #{tpu_custom_call.1} parent=1 // pred_fallthru
      _
    // Predicated region
    $region30: #{tpu_custom_call.1} parent=1 // pred_check
      _
    $region31: #{tpu_custom_call.1} parent=1 // pred_check_branch
      %30 = sbr.rel (0) target = $region33
    $region32: #{tpu_custom_call.1} parent=1 // pred_region
      _
    $region33: #{tpu_custom_call.1} parent=1 // pred_fallthru
      _
    // Predicated region
    $region34: #{tpu_custom_call.1} parent=1 // pred_check
      _
    $region35: #{tpu_custom_call.1} parent=1 // pred_check_branch
      %32 = sbr.rel (0) target = $region37
    $region36: #{tpu_custom_call.1} parent=1 // pred_region
      _
    $region37: #{tpu_custom_call.1} parent=1 // pred_fallthru
      _
    %v34 = vld [vmem:[%s0] sm:$0xff]
    %v35 = vld [vmem:[%s0 + $0x8] sm:$0xff]
    %v36 = vld [vmem:[%s1] sm:$0xff]
    %v37 = vld [vmem:[%s1 + $0x8] sm:$0xff]
    %v38 = vld [vmem:[%s2] sm:$0xff]
    %v39 = vld [vmem:[%s2 + $0x8] sm:$0xff]
    %v40 = vpack.c.bf16 %v35, %v34
    %v41 = vld [vmem:[%s3] sm:$0xf]
    %v42 = vld [vmem:[%s3 + $0x4] sm:$0xf]
    %v43 = vld [vmem:[%s3 + $0x8] sm:$0xf]
    %v44 = vld [vmem:[%s3 + $0xc] sm:$0xf]
    %v45 = vpack.c.bf16 %v37, %v36
    %v46 = vld [vmem:[%s3 + $0x10] sm:$0xf]
    %v47 = vld [vmem:[%s3 + $0x14] sm:$0xf]
    %v48 = vld [vmem:[%s3 + $0x18] sm:$0xf]
    %v49 = vld [vmem:[%s3 + $0x1c] sm:$0xf]
    %v54 = vunpack.c.l.b16 %v46
    %v55 = vunpack.c.l.b16 %v47
    %v56 = vunpack.c.l.b16 %v48
    %v57 = vunpack.c.l.b16 %v49
    %v58 = vpack.c.b16 %v55, %v54
    %v59 = vpack.c.b16 %v57, %v56
    %vm62 = vcmask 261120
    %v64 = vsel %vm62, %v45, 0
    %66 = vmatprep.subr.bf16.mxu0 0
    %67 = vmatpush1.bf16.msra.mxu0 0
    %68 = vmatprep.subr.bf16.mxu0 0
    %69 = vmatpush1.bf16.msra.mxu0 0
    %70 = vmatprep.subr.bf16.mxu0 0
    %71 = vmatpush1.bf16.msra.mxu0 0
    %72 = vmatprep.subr.bf16.mxu0 0
    %73 = vmatpush1.bf16.msra.mxu0 0
    %74 = vmatprep.subr.bf16.mxu0 0
    %75 = vmatpush1.bf16.msra.mxu0 0
    %76 = vmatprep.subr.bf16.mxu0 0
    %77 = vmatpush1.bf16.msra.mxu0 0
    %78 = vmatprep.subr.bf16.mxu0 0
    %79 = vmatpush1.bf16.msra.mxu0 %v59
    %80 = vmatprep.subr.bf16.mxu0 0
    %81 = vmatpush1.bf16.msra.mxu0 %v58
    %82 = vmatprep.subr.bf16.mxu0 0
    %83 = vmatpush2.bf16.msra.mxu0 0
    %84 = vmatprep.subr.bf16.mxu0 0
    %85 = vmatpush2.bf16.msra.mxu0 0
    %86 = vmatprep.subr.bf16.mxu0 0
    %87 = vmatpush2.bf16.msra.mxu0 0
    %88 = vmatprep.subr.bf16.mxu0 0
    %89 = vmatpush2.bf16.msra.mxu0 0
    %90 = vmatprep.subr.bf16.mxu0 0
    %91 = vmatpush2.bf16.msra.mxu0 0
    %92 = vmatprep.subr.bf16.mxu0 0
    %93 = vmatpush2.bf16.msra.mxu0 0
    %94 = vmatprep.subr.bf16.mxu0 0
    %95 = vmatpush2.bf16.msra.mxu0 0
    %96 = vmatprep.subr.bf16.mxu0 0
    %97 = vmatpush2.bf16.msra.mxu0 0
    %98 = vmatprep.mubr.bf16.mxu0 0
    %99 = vmatmul.mubr.bf16.gmra.mxu0 %v64
    %v100 = vpop.f32.mrf.mxu0
    %v101 = vadd.f32 0.0, %v100
    %v102 = vpop.f32.mrf.mxu0
    %v103 = vpop.f32.mrf.mxu0
    %v104 = vadd.f32 0.0, %v103
    %v105 = vpop.f32.mrf.mxu0
    %106 = vdwg.mxu0
    %v111 = vunpack.c.l.b16 %v41
    %v112 = vunpack.c.l.b16 %v42
    %v113 = vunpack.c.l.b16 %v43
    %v114 = vunpack.c.l.b16 %v44
    %v115 = vpack.c.b16 %v112, %v111
    %v116 = vpack.c.b16 %v114, %v113
    %v120 = vsel %vm62, %v40, 0
    %122 = vmatprep.subr.bf16.mxu0 0
    %123 = vmatpush1.bf16.msra.mxu0 0
    %124 = vmatprep.subr.bf16.mxu0 0
    %125 = vmatpush1.bf16.msra.mxu0 0
    %126 = vmatprep.subr.bf16.mxu0 0
    %127 = vmatpush1.bf16.msra.mxu0 0
    %128 = vmatprep.subr.bf16.mxu0 0
    %129 = vmatpush1.bf16.msra.mxu0 0
    %130 = vmatprep.subr.bf16.mxu0 0
    %131 = vmatpush1.bf16.msra.mxu0 0
    %132 = vmatprep.subr.bf16.mxu0 0
    %133 = vmatpush1.bf16.msra.mxu0 0
    %134 = vmatprep.subr.bf16.mxu0 0
    %135 = vmatpush1.bf16.msra.mxu0 %v116
    %136 = vmatprep.subr.bf16.mxu0 0
    %137 = vmatpush1.bf16.msra.mxu0 %v115
    %138 = vmatprep.subr.bf16.mxu0 0
    %139 = vmatpush2.bf16.msra.mxu0 0
    %140 = vmatprep.subr.bf16.mxu0 0
    %141 = vmatpush2.bf16.msra.mxu0 0
    %142 = vmatprep.subr.bf16.mxu0 0
    %143 = vmatpush2.bf16.msra.mxu0 0
    %144 = vmatprep.subr.bf16.mxu0 0
    %145 = vmatpush2.bf16.msra.mxu0 0
    %146 = vmatprep.subr.bf16.mxu0 0
    %147 = vmatpush2.bf16.msra.mxu0 0
    %148 = vmatprep.subr.bf16.mxu0 0
    %149 = vmatpush2.bf16.msra.mxu0 0
    %150 = vmatprep.subr.bf16.mxu0 0
    %151 = vmatpush2.bf16.msra.mxu0 0
    %152 = vmatprep.subr.bf16.mxu0 0
    %153 = vmatpush2.bf16.msra.mxu0 0
    %154 = vmatprep.mubr.bf16.mxu0 0
    %155 = vmatmul.mubr.bf16.gmra.mxu0 %v120
    %v156 = vpop.f32.mrf.mxu0
    %v157 = vadd.f32 %v101, %v156
    %v158 = vpop.f32.mrf.mxu0
    %v159 = vpop.f32.mrf.mxu0
    %v160 = vadd.f32 %v104, %v159
    %v161 = vpop.f32.mrf.mxu0
    %162 = vdwg.mxu0
    %v163 = vmul.f32 %v34, %v36
    %v164 = vmul.f32 %v35, %v37
    %v165 = vpack.c.bf16 %v164, %v163
    %v166 = vld [vmem:[%s3 + $0x20] sm:$0xf]
    %v167 = vld [vmem:[%s3 + $0x24] sm:$0xf]
    %v168 = vld [vmem:[%s3 + $0x28] sm:$0xf]
    %v169 = vld [vmem:[%s3 + $0x2c] sm:$0xf]
    %v174 = vunpack.c.l.b16 %v166
    %v175 = vunpack.c.l.b16 %v167
    %v176 = vunpack.c.l.b16 %v168
    %v177 = vunpack.c.l.b16 %v169
    %v178 = vpack.c.b16 %v175, %v174
    %v179 = vpack.c.b16 %v177, %v176
    %v183 = vsel %vm62, %v165, 0
    %185 = vmatprep.subr.bf16.mxu0 0
    %186 = vmatpush1.bf16.msra.mxu0 0
    %187 = vmatprep.subr.bf16.mxu0 0
    %188 = vmatpush1.bf16.msra.mxu0 0
    %189 = vmatprep.subr.bf16.mxu0 0
    %190 = vmatpush1.bf16.msra.mxu0 0
    %191 = vmatprep.subr.bf16.mxu0 0
    %192 = vmatpush1.bf16.msra.mxu0 0
    %193 = vmatprep.subr.bf16.mxu0 0
    %194 = vmatpush1.bf16.msra.mxu0 0
    %195 = vmatprep.subr.bf16.mxu0 0
    %196 = vmatpush1.bf16.msra.mxu0 0
    %197 = vmatprep.subr.bf16.mxu0 0
    %198 = vmatpush1.bf16.msra.mxu0 %v179
    %199 = vmatprep.subr.bf16.mxu0 0
    %200 = vmatpush1.bf16.msra.mxu0 %v178
    %201 = vmatprep.subr.bf16.mxu0 0
    %202 = vmatpush2.bf16.msra.mxu0 0
    %203 = vmatprep.subr.bf16.mxu0 0
    %204 = vmatpush2.bf16.msra.mxu0 0
    %205 = vmatprep.subr.bf16.mxu0 0
    %206 = vmatpush2.bf16.msra.mxu0 0
    %207 = vmatprep.subr.bf16.mxu0 0
    %208 = vmatpush2.bf16.msra.mxu0 0
    %209 = vmatprep.subr.bf16.mxu0 0
    %210 = vmatpush2.bf16.msra.mxu0 0
    %211 = vmatprep.subr.bf16.mxu0 0
    %212 = vmatpush2.bf16.msra.mxu0 0
    %213 = vmatprep.subr.bf16.mxu0 0
    %214 = vmatpush2.bf16.msra.mxu0 0
    %215 = vmatprep.subr.bf16.mxu0 0
    %216 = vmatpush2.bf16.msra.mxu0 0
    %217 = vmatprep.mubr.bf16.mxu0 0
    %218 = vmatmul.mubr.bf16.gmra.mxu0 %v183
    %v219 = vpop.f32.mrf.mxu0
    %v220 = vadd.f32 0.0, %v219
    %v221 = vpop.f32.mrf.mxu0
    %v222 = vpop.f32.mrf.mxu0
    %v223 = vadd.f32 0.0, %v222
    %v224 = vpop.f32.mrf.mxu0
    %225 = vdwg.mxu0
    %v226 = vadd.f32 %v157, %v220
    %v227 = vadd.f32 %v160, %v223
    %v228 = vld [vmem:[%s4] sm:$0x1]
    %v230 = vlaneseq
    %v231 = vshrl.u32 %v230, 7
    %v232 = vsub.s32 0, %v231
    %v233 = vrot.slane %v228, %v232
    %v235 = vadd.f32 %v226, %v233
    %v236 = vadd.f32 %v227, %v233
    %v237 = vmax.f32 %v235, 0.0
    %v238 = vmax.f32 %v236, 0.0
    %v239 = vld [vmem:[%s5] sm:$0xf]
    %v240 = vld [vmem:[%s5 + $0x4] sm:$0xf]
    %v241 = vld [vmem:[%s5 + $0x8] sm:$0xf]
    %v242 = vld [vmem:[%s5 + $0xc] sm:$0xf]
    %v243 = vpack.c.bf16 %v39, %v38
    %v244 = vld [vmem:[%s5 + $0x10] sm:$0xf]
    %v245 = vld [vmem:[%s5 + $0x14] sm:$0xf]
    %v246 = vld [vmem:[%s5 + $0x18] sm:$0xf]
    %v247 = vld [vmem:[%s5 + $0x1c] sm:$0xf]
    %v252 = vunpack.c.l.b16 %v244
    %v253 = vunpack.c.l.b16 %v245
    %v254 = vunpack.c.l.b16 %v246
    %v255 = vunpack.c.l.b16 %v247
    %v256 = vpack.c.b16 %v253, %v252
    %v257 = vpack.c.b16 %v255, %v254
    %v261 = vsel %vm62, %v243, 0
    %263 = vmatprep.subr.bf16.mxu0 0
    %264 = vmatpush1.bf16.msra.mxu0 0
    %265 = vmatprep.subr.bf16.mxu0 0
    %266 = vmatpush1.bf16.msra.mxu0 0
    %267 = vmatprep.subr.bf16.mxu0 0
    %268 = vmatpush1.bf16.msra.mxu0 0
    %269 = vmatprep.subr.bf16.mxu0 0
    %270 = vmatpush1.bf16.msra.mxu0 0
    %271 = vmatprep.subr.bf16.mxu0 0
    %272 = vmatpush1.bf16.msra.mxu0 0
    %273 = vmatprep.subr.bf16.mxu0 0
    %274 = vmatpush1.bf16.msra.mxu0 0
    %275 = vmatprep.subr.bf16.mxu0 0
    %276 = vmatpush1.bf16.msra.mxu0 %v257
    %277 = vmatprep.subr.bf16.mxu0 0
    %278 = vmatpush1.bf16.msra.mxu0 %v256
    %279 = vmatprep.subr.bf16.mxu0 0
    %280 = vmatpush2.bf16.msra.mxu0 0
    %281 = vmatprep.subr.bf16.mxu0 0
    %282 = vmatpush2.bf16.msra.mxu0 0
    %283 = vmatprep.subr.bf16.mxu0 0
    %284 = vmatpush2.bf16.msra.mxu0 0
    %285 = vmatprep.subr.bf16.mxu0 0
    %286 = vmatpush2.bf16.msra.mxu0 0
    %287 = vmatprep.subr.bf16.mxu0 0
    %288 = vmatpush2.bf16.msra.mxu0 0
    %289 = vmatprep.subr.bf16.mxu0 0
    %290 = vmatpush2.bf16.msra.mxu0 0
    %291 = vmatprep.subr.bf16.mxu0 0
    %292 = vmatpush2.bf16.msra.mxu0 0
    %293 = vmatprep.subr.bf16.mxu0 0
    %294 = vmatpush2.bf16.msra.mxu0 0
    %295 = vmatprep.mubr.bf16.mxu0 0
    %296 = vmatmul.mubr.bf16.gmra.mxu0 %v261
    %v297 = vpop.f32.mrf.mxu0
    %v298 = vadd.f32 0.0, %v297
    %v299 = vpop.f32.mrf.mxu0
    %v300 = vpop.f32.mrf.mxu0
    %v301 = vadd.f32 0.0, %v300
    %v302 = vpop.f32.mrf.mxu0
    %303 = vdwg.mxu0
    %v308 = vunpack.c.l.b16 %v239
    %v309 = vunpack.c.l.b16 %v240
    %v310 = vunpack.c.l.b16 %v241
    %v311 = vunpack.c.l.b16 %v242
    %v312 = vpack.c.b16 %v309, %v308
    %v313 = vpack.c.b16 %v311, %v310
    %316 = vmatprep.subr.bf16.mxu0 0
    %317 = vmatpush1.bf16.msra.mxu0 0
    %318 = vmatprep.subr.bf16.mxu0 0
    %319 = vmatpush1.bf16.msra.mxu0 0
    %320 = vmatprep.subr.bf16.mxu0 0
    %321 = vmatpush1.bf16.msra.mxu0 0
    %322 = vmatprep.subr.bf16.mxu0 0
    %323 = vmatpush1.bf16.msra.mxu0 0
    %324 = vmatprep.subr.bf16.mxu0 0
    %325 = vmatpush1.bf16.msra.mxu0 0
    %326 = vmatprep.subr.bf16.mxu0 0
    %327 = vmatpush1.bf16.msra.mxu0 0
    %328 = vmatprep.subr.bf16.mxu0 0
    %329 = vmatpush1.bf16.msra.mxu0 %v313
    %330 = vmatprep.subr.bf16.mxu0 0
    %331 = vmatpush1.bf16.msra.mxu0 %v312
    %332 = vmatprep.subr.bf16.mxu0 0
    %333 = vmatpush2.bf16.msra.mxu0 0
    %334 = vmatprep.subr.bf16.mxu0 0
    %335 = vmatpush2.bf16.msra.mxu0 0
    %336 = vmatprep.subr.bf16.mxu0 0
    %337 = vmatpush2.bf16.msra.mxu0 0
    %338 = vmatprep.subr.bf16.mxu0 0
    %339 = vmatpush2.bf16.msra.mxu0 0
    %340 = vmatprep.subr.bf16.mxu0 0
    %341 = vmatpush2.bf16.msra.mxu0 0
    %342 = vmatprep.subr.bf16.mxu0 0
    %343 = vmatpush2.bf16.msra.mxu0 0
    %344 = vmatprep.subr.bf16.mxu0 0
    %345 = vmatpush2.bf16.msra.mxu0 0
    %346 = vmatprep.subr.bf16.mxu0 0
    %347 = vmatpush2.bf16.msra.mxu0 0
    %348 = vmatprep.mubr.bf16.mxu0 0
    %349 = vmatmul.mubr.bf16.gmra.mxu0 %v120
    %v350 = vpop.f32.mrf.mxu0
    %v351 = vadd.f32 %v298, %v350
    %v352 = vpop.f32.mrf.mxu0
    %v353 = vpop.f32.mrf.mxu0
    %v354 = vadd.f32 %v301, %v353
    %v355 = vpop.f32.mrf.mxu0
    %356 = vdwg.mxu0
    %v357 = vmul.f32 %v34, %v38
    %v358 = vmul.f32 %v35, %v39
    %v359 = vpack.c.bf16 %v358, %v357
    %v360 = vld [vmem:[%s5 + $0x20] sm:$0xf]
    %v361 = vld [vmem:[%s5 + $0x24] sm:$0xf]
    %v362 = vld [vmem:[%s5 + $0x28] sm:$0xf]
    %v363 = vld [vmem:[%s5 + $0x2c] sm:$0xf]
    %v368 = vunpack.c.l.b16 %v360
    %v369 = vunpack.c.l.b16 %v361
    %v370 = vunpack.c.l.b16 %v362
    %v371 = vunpack.c.l.b16 %v363
    %v372 = vpack.c.b16 %v369, %v368
    %v373 = vpack.c.b16 %v371, %v370
    %v377 = vsel %vm62, %v359, 0
    %379 = vmatprep.subr.bf16.mxu0 0
    %380 = vmatpush1.bf16.msra.mxu0 0
    %381 = vmatprep.subr.bf16.mxu0 0
    %382 = vmatpush1.bf16.msra.mxu0 0
    %383 = vmatprep.subr.bf16.mxu0 0
    %384 = vmatpush1.bf16.msra.mxu0 0
    %385 = vmatprep.subr.bf16.mxu0 0
    %386 = vmatpush1.bf16.msra.mxu0 0
    %387 = vmatprep.subr.bf16.mxu0 0
    %388 = vmatpush1.bf16.msra.mxu0 0
    %389 = vmatprep.subr.bf16.mxu0 0
    %390 = vmatpush1.bf16.msra.mxu0 0
    %391 = vmatprep.subr.bf16.mxu0 0
    %392 = vmatpush1.bf16.msra.mxu0 %v373
    %393 = vmatprep.subr.bf16.mxu0 0
    %394 = vmatpush1.bf16.msra.mxu0 %v372
    %395 = vmatprep.subr.bf16.mxu0 0
    %396 = vmatpush2.bf16.msra.mxu0 0
    %397 = vmatprep.subr.bf16.mxu0 0
    %398 = vmatpush2.bf16.msra.mxu0 0
    %399 = vmatprep.subr.bf16.mxu0 0
    %400 = vmatpush2.bf16.msra.mxu0 0
    %401 = vmatprep.subr.bf16.mxu0 0
    %402 = vmatpush2.bf16.msra.mxu0 0
    %403 = vmatprep.subr.bf16.mxu0 0
    %404 = vmatpush2.bf16.msra.mxu0 0
    %405 = vmatprep.subr.bf16.mxu0 0
    %406 = vmatpush2.bf16.msra.mxu0 0
    %407 = vmatprep.subr.bf16.mxu0 0
    %408 = vmatpush2.bf16.msra.mxu0 0
    %409 = vmatprep.subr.bf16.mxu0 0
    %410 = vmatpush2.bf16.msra.mxu0 0
    %411 = vmatprep.mubr.bf16.mxu0 0
    %412 = vmatmul.mubr.bf16.gmra.mxu0 %v377
    %v413 = vpop.f32.mrf.mxu0
    %v414 = vadd.f32 0.0, %v413
    %v415 = vpop.f32.mrf.mxu0
    %v416 = vpop.f32.mrf.mxu0
    %v417 = vadd.f32 0.0, %v416
    %v418 = vpop.f32.mrf.mxu0
    %419 = vdwg.mxu0
    %v420 = vadd.f32 %v351, %v414
    %v421 = vadd.f32 %v354, %v417
    %v422 = vld [vmem:[%s6] sm:$0x1]
    %v424 = vlaneseq
    %v425 = vshrl.u32 %v424, 7
    %v426 = vsub.s32 0, %v425
    %v427 = vrot.slane %v422, %v426
    %v429 = vadd.f32 %v420, %v427
    %v430 = vadd.f32 %v421, %v427
    %v431 = vmax.f32 %v429, 0.0
    %v432 = vmax.f32 %v430, 0.0
    %v433 = vpack.c.bf16 %v238, %v237
    %v434 = vld [vmem:[%s7] sm:$0xf]
    %v435 = vld [vmem:[%s7 + $0x4] sm:$0xf]
    %v436 = vld [vmem:[%s7 + $0x8] sm:$0xf]
    %v437 = vld [vmem:[%s7 + $0xc] sm:$0xf]
    %v438 = vpack.c.bf16 %v432, %v431
    %v439 = vld [vmem:[%s7 + $0x10] sm:$0xf]
    %v440 = vld [vmem:[%s7 + $0x14] sm:$0xf]
    %v441 = vld [vmem:[%s7 + $0x18] sm:$0xf]
    %v442 = vld [vmem:[%s7 + $0x1c] sm:$0xf]
    %v447 = vunpack.c.l.b16 %v439
    %v448 = vunpack.c.l.b16 %v440
    %v449 = vunpack.c.l.b16 %v441
    %v450 = vunpack.c.l.b16 %v442
    %v451 = vpack.c.b16 %v448, %v447
    %v452 = vpack.c.b16 %v450, %v449
    %v456 = vsel %vm62, %v438, 0
    %458 = vmatprep.subr.bf16.mxu0 0
    %459 = vmatpush1.bf16.msra.mxu0 0
    %460 = vmatprep.subr.bf16.mxu0 0
    %461 = vmatpush1.bf16.msra.mxu0 0
    %462 = vmatprep.subr.bf16.mxu0 0
    %463 = vmatpush1.bf16.msra.mxu0 0
    %464 = vmatprep.subr.bf16.mxu0 0
    %465 = vmatpush1.bf16.msra.mxu0 0
    %466 = vmatprep.subr.bf16.mxu0 0
    %467 = vmatpush1.bf16.msra.mxu0 0
    %468 = vmatprep.subr.bf16.mxu0 0
    %469 = vmatpush1.bf16.msra.mxu0 0
    %470 = vmatprep.subr.bf16.mxu0 0
    %471 = vmatpush1.bf16.msra.mxu0 %v452
    %472 = vmatprep.subr.bf16.mxu0 0
    %473 = vmatpush1.bf16.msra.mxu0 %v451
    %474 = vmatprep.subr.bf16.mxu0 0
    %475 = vmatpush2.bf16.msra.mxu0 0
    %476 = vmatprep.subr.bf16.mxu0 0
    %477 = vmatpush2.bf16.msra.mxu0 0
    %478 = vmatprep.subr.bf16.mxu0 0
    %479 = vmatpush2.bf16.msra.mxu0 0
    %480 = vmatprep.subr.bf16.mxu0 0
    %481 = vmatpush2.bf16.msra.mxu0 0
    %482 = vmatprep.subr.bf16.mxu0 0
    %483 = vmatpush2.bf16.msra.mxu0 0
    %484 = vmatprep.subr.bf16.mxu0 0
    %485 = vmatpush2.bf16.msra.mxu0 0
    %486 = vmatprep.subr.bf16.mxu0 0
    %487 = vmatpush2.bf16.msra.mxu0 0
    %488 = vmatprep.subr.bf16.mxu0 0
    %489 = vmatpush2.bf16.msra.mxu0 0
    %490 = vmatprep.mubr.bf16.mxu0 0
    %491 = vmatmul.mubr.bf16.gmra.mxu0 %v456
    %v492 = vpop.f32.mrf.mxu0
    %v493 = vadd.f32 0.0, %v492
    %v494 = vpop.f32.mrf.mxu0
    %v495 = vpop.f32.mrf.mxu0
    %v496 = vadd.f32 0.0, %v495
    %v497 = vpop.f32.mrf.mxu0
    %498 = vdwg.mxu0
    %v503 = vunpack.c.l.b16 %v434
    %v504 = vunpack.c.l.b16 %v435
    %v505 = vunpack.c.l.b16 %v436
    %v506 = vunpack.c.l.b16 %v437
    %v507 = vpack.c.b16 %v504, %v503
    %v508 = vpack.c.b16 %v506, %v505
    %v512 = vsel %vm62, %v433, 0
    %514 = vmatprep.subr.bf16.mxu0 0
    %515 = vmatpush1.bf16.msra.mxu0 0
    %516 = vmatprep.subr.bf16.mxu0 0
    %517 = vmatpush1.bf16.msra.mxu0 0
    %518 = vmatprep.subr.bf16.mxu0 0
    %519 = vmatpush1.bf16.msra.mxu0 0
    %520 = vmatprep.subr.bf16.mxu0 0
    %521 = vmatpush1.bf16.msra.mxu0 0
    %522 = vmatprep.subr.bf16.mxu0 0
    %523 = vmatpush1.bf16.msra.mxu0 0
    %524 = vmatprep.subr.bf16.mxu0 0
    %525 = vmatpush1.bf16.msra.mxu0 0
    %526 = vmatprep.subr.bf16.mxu0 0
    %527 = vmatpush1.bf16.msra.mxu0 %v508
    %528 = vmatprep.subr.bf16.mxu0 0
    %529 = vmatpush1.bf16.msra.mxu0 %v507
    %530 = vmatprep.subr.bf16.mxu0 0
    %531 = vmatpush2.bf16.msra.mxu0 0
    %532 = vmatprep.subr.bf16.mxu0 0
    %533 = vmatpush2.bf16.msra.mxu0 0
    %534 = vmatprep.subr.bf16.mxu0 0
    %535 = vmatpush2.bf16.msra.mxu0 0
    %536 = vmatprep.subr.bf16.mxu0 0
    %537 = vmatpush2.bf16.msra.mxu0 0
    %538 = vmatprep.subr.bf16.mxu0 0
    %539 = vmatpush2.bf16.msra.mxu0 0
    %540 = vmatprep.subr.bf16.mxu0 0
    %541 = vmatpush2.bf16.msra.mxu0 0
    %542 = vmatprep.subr.bf16.mxu0 0
    %543 = vmatpush2.bf16.msra.mxu0 0
    %544 = vmatprep.subr.bf16.mxu0 0
    %545 = vmatpush2.bf16.msra.mxu0 0
    %546 = vmatprep.mubr.bf16.mxu0 0
    %547 = vmatmul.mubr.bf16.gmra.mxu0 %v512
    %v548 = vpop.f32.mrf.mxu0
    %v549 = vadd.f32 %v493, %v548
    %v550 = vpop.f32.mrf.mxu0
    %v551 = vpop.f32.mrf.mxu0
    %v552 = vadd.f32 %v496, %v551
    %v553 = vpop.f32.mrf.mxu0
    %554 = vdwg.mxu0
    %v555 = vld [vmem:[%s8] sm:$0x1]
    %v557 = vlaneseq
    %v558 = vshrl.u32 %v557, 7
    %v559 = vsub.s32 0, %v558
    %v560 = vrot.slane %v555, %v559
    %v562 = vadd.f32 %v549, %v560
    %v563 = vadd.f32 %v552, %v560
    %v564 = vxor.u32 %v562, 2147483648
    %v565 = vxor.u32 %v563, 2147483648
    %v566 = vmul.f32 %v564, 1.442695
    %v567 = vpow.pop %v566
    %v568 = vmul.f32 %v565, 1.442695
    %v569 = vpow.pop %v568
    %v570 = vadd.f32 %v567, 1.0
    %v571 = vadd.f32 %v569, 1.0
    %v572 = vrcp.pop %v570
    %v573 = vmul.f32 1.0, %v572
    %v574 = vrcp.pop %v571
    %v575 = vmul.f32 1.0, %v574
    %v576 = vmul.f32 %v573, %v36
    %v577 = vmul.f32 %v575, %v37
    %v578 = vsub.f32 1.0, %v573
    %v579 = vsub.f32 1.0, %v575
    %v580 = vmul.f32 %v578, %v38
    %v581 = vmul.f32 %v579, %v39
    %v582 = vadd.f32 %v576, %v580
    %v583 = vadd.f32 %v577, %v581
    %584 = vst.msk [vmem:[#allocation2] sm:$0xff] %vm62, %v582
    %585 = vst.msk [vmem:[#allocation2 + $0x8] sm:$0xff] %vm62, %v583
    // Predicated region
    $region38: #{tpu_custom_call.1} parent=1 // pred_check
      _
    $region39: #{tpu_custom_call.1} parent=1 // pred_check_branch
      %587 = sbr.rel (0) target = $region41
    $region40: #{tpu_custom_call.1} parent=1 // pred_region
      %s589 = ssub.s32 256, 256
      %590 = vsyncadd [#allocation3], %s589
      %s591 = sshll.u32 [#allocation2], 4
      %s592 = int_to_ptr.vmem [resolvable:$true] %s591
      %597 = dma.vmem_to_hbm [thread:$0]  %s592, 256, %s9, [#allocation3], 128, 128, 8
    $region41: #{tpu_custom_call.1} parent=1 // pred_fallthru
      _
    // Predicated region
    $region42: #{tpu_custom_call.1} parent=1 // pred_check
      _
    $region43: #{tpu_custom_call.1} parent=1 // pred_check_branch
      %599 = sbr.rel (0) target = $region45
    $region44: #{tpu_custom_call.1} parent=1 // pred_region
      %600 = dma.done [#allocation3], 256
    $region45: #{tpu_custom_call.1} parent=1 // pred_fallthru
      _
    %601 = vsyncpa [#allocation3], 1

</llo_original>
